<compile_context>
chip_gen: v7x
topology: tpu7x:2x2x1
jax: 0.10.0
libtpu: 0.0.40
codegen_flags: <defaults>
</compile_context>

<pallas_src>
import math

import jax
import jax.numpy as jnp
from jax.experimental import pallas as pl
from jax.experimental.pallas import tpu as pltpu


# ---------------------------------------------------------------------------
# Copy kernel body: straight VMEM copy of the current (lane-dense) tile.
# Partial boundary blocks are handled by Pallas (OOB writes are dropped).
# ---------------------------------------------------------------------------
def _copy_kernel(x_ref, o_ref):
    o_ref[...] = x_ref[...]


_TILE_BUDGET_BYTES = 6 * 1024 * 1024     # per-block; x2 arrays x2 buffers ~ 24 MiB
_VMEM_LIMIT_BYTES = 32 * 1024 * 1024     # safe scoped limit on v5e/v6e/v7x
_MIN_GRID_STEPS = 8                      # keep DMAs streaming + v7x 2-TC split
_LANE_WIDTHS = (1024, 512, 256, 128)     # lane-dense; capped so rows stay plentiful
_RAGGED_FULL_MAX = 256 * 1024            # ragged totals up to this: one full block
_RAGGED_BLOCK_LEN = 64 * 1024            # ragged tiled block length (multiple of 128)


def _round_up(x, m):
    return ((x + m - 1) // m) * m


def _sublane_multiple(dtype):
    itemsize = jnp.dtype(dtype).itemsize
    return max(8, 32 // max(1, itemsize))   # 8 (f32), 16 (bf16), 32 (int8/fp8)


def _compiler_params():
    return pltpu.CompilerParams(
        dimension_semantics=("parallel",),
        vmem_limit_bytes=_VMEM_LIMIT_BYTES,
    )


def _pick_tile_rows(rows, row_bytes, sub):
    """Row tile near the VMEM budget, a multiple of `sub`, giving >= 8 (even
    when possible) grid steps so input/output DMAs overlap (cdiv grid: the
    tile does NOT need to divide `rows`)."""
    budget_rows = max(sub, (_TILE_BUDGET_BYTES // row_bytes) // sub * sub)
    if rows <= budget_rows:
        if rows >= _MIN_GRID_STEPS * sub:
            # Whole array would fit in one block; split anyway for streaming
            # and the v7x two-TensorCore grid shard.
            return _round_up(pl.cdiv(rows, _MIN_GRID_STEPS), sub)
        return rows                       # tiny: one block == full row extent
    steps = pl.cdiv(rows, budget_rows)
    if steps < _MIN_GRID_STEPS:
        steps = min(_MIN_GRID_STEPS, pl.cdiv(rows, sub))
    if steps > 1 and steps % 2:
        steps += 1                        # even step count -> clean megacore split
    return max(sub, _round_up(pl.cdiv(rows, steps), sub))


def _pallas_copy_2d(x2d, tile_rows):
    rows, C = x2d.shape
    grid = (pl.cdiv(rows, tile_rows),)    # last block may be partial (masked)
    return pl.pallas_call(
        _copy_kernel,
        out_shape=jax.ShapeDtypeStruct((rows, C), x2d.dtype),
        grid=grid,
        in_specs=[pl.BlockSpec((tile_rows, C), lambda i: (i, 0))],
        out_specs=pl.BlockSpec((tile_rows, C), lambda i: (i, 0)),
        compiler_params=_compiler_params(),
    )(x2d)


def _pallas_copy_1d(x_flat, block_len):
    total = x_flat.shape[0]
    grid = (pl.cdiv(total, block_len),)   # last block may be partial (masked)
    return pl.pallas_call(
        _copy_kernel,
        out_shape=jax.ShapeDtypeStruct((total,), x_flat.dtype),
        grid=grid,
        in_specs=[pl.BlockSpec((block_len,), lambda i: (i,))],
        out_specs=pl.BlockSpec((block_len,), lambda i: (i,)),
        compiler_params=_compiler_params(),
    )(x_flat)


def pallas_view_copy(x_flat):
    """Single-pass materializing copy of a flat contiguous buffer."""
    total = x_flat.shape[0]
    dtype = x_flat.dtype
    itemsize = jnp.dtype(dtype).itemsize
    sub = _sublane_multiple(dtype)

    # Lane-dense 2-D framing whenever the flat length admits one (the common
    # case for NN tensors: any total divisible by 128).  Each block spans the
    # full lane width -> fully contiguous in HBM -> one large DMA per step.
    for C in _LANE_WIDTHS:
        if total % C == 0 and total >= C:
            rows = total // C
            tile_rows = _pick_tile_rows(rows, C * itemsize, sub)
            y2d = _pallas_copy_2d(x_flat.reshape(rows, C), tile_rows)
            return y2d.reshape(total)

    # Ragged sizes (total not a multiple of 128): handled entirely in-kernel
    # with 1-D blocks (full-array block when small, 128-aligned tiles with a
    # masked partial last block when large) -- still exactly one HBM pass each
    # way, no pad/concatenate and no trailing slice.
    block_len = total if total <= _RAGGED_FULL_MAX else _RAGGED_BLOCK_LEN
    return _pallas_copy_1d(x_flat, block_len)


# ---------------------------------------------------------------------------
# View module
# ---------------------------------------------------------------------------
class View:
    """JAX/Pallas equivalent of the PyTorch View module (tensor.view(*shape)).

    Default path is metadata-only (zero bytes moved), matching torch.view()
    on a contiguous tensor.  Set materialize=True to route the data through
    the Pallas copy kernel.
    """

    def __init__(self, *shape, materialize=False):
        self.shape = shape
        self.materialize = materialize

    def _resolve_shape(self, inputs):
        total = math.prod(inputs.shape)
        shape = list(self.shape)
        n_infer = sum(1 for d in shape if d == -1)
        assert n_infer <= 1, "only one view dimension may be -1"
        if n_infer:
            idx = shape.index(-1)
            known = math.prod(d for d in shape if d != -1)
            assert known > 0 and total % known == 0, "view shape incompatible with input"
            shape[idx] = total // known
        assert math.prod(shape) == total, "view shape incompatible with input"
        return tuple(shape)

    def __call__(self, inputs):
        shape = self._resolve_shape(inputs)
        if not self.materialize:
            # torch .view() on a contiguous tensor is metadata-only; so is this.
            return inputs.reshape(shape)
        total = math.prod(inputs.shape)
        if total == 0:
            return inputs.reshape(shape)
        y_flat = pallas_view_copy(inputs.reshape(total))
        return y_flat.reshape(shape)


if __name__ == "__main__":
    key = jax.random.PRNGKey(0)
    k0, k1, k2 = jax.random.split(key, 3)

    # NCHW input (2, 4, 16, 16) viewed as (batch, -1) -> (2, 1024).
    x = jax.random.normal(k0, (2, 4, 16, 16), dtype=jnp.float32)
    x_ref2d = x.reshape(2, -1)

    # 1) Default zero-copy path (metadata-only, exactly like torch.view()).
    y_meta = jax.block_until_ready(View(2, -1)(x))
    assert y_meta.shape == (2, 1024) and y_meta.dtype == x.dtype
    assert bool(jnp.array_equal(y_meta, x_ref2d))

    # 2) Materialized path through the lane-dense 2-D copy kernel.
    y_pal = jax.block_until_ready(View(2, -1, materialize=True)(x))
    assert y_pal.shape == (2, 1024) and y_pal.dtype == x.dtype
    assert bool(jnp.array_equal(y_pal, x_ref2d))

    # 3) Multi-step cdiv grid with a partial (masked) last row-block:
    #    total = 102400 -> (100, 1024), tile_rows = 16, grid = 7.
    x_big = jax.random.normal(k1, (4, 25, 32, 32), dtype=jnp.float32)
    y_big = jax.block_until_ready(View(4, -1, materialize=True)(x_big))
    assert y_big.shape == (4, 25600)
    assert bool(jnp.array_equal(y_big, x_big.reshape(4, -1)))

    # 4) Ragged size (not a multiple of 128): handled in-kernel, no pad/slice.
    x_odd = jax.random.normal(k2, (3, 5, 7), dtype=jnp.float32)
    y_odd = jax.block_until_ready(View(-1, materialize=True)(x_odd))
    assert y_odd.shape == (105,)
    assert bool(jnp.array_equal(y_odd, x_odd.reshape(-1)))

    # 5) dtype-aware sublane multiple (bf16 -> 16-row granularity).
    x_bf = x.astype(jnp.bfloat16)
    y_bf = jax.block_until_ready(View(2, 4, 256, materialize=True)(x_bf))
    assert y_bf.shape == (2, 4, 256) and y_bf.dtype == jnp.bfloat16
    assert bool(jnp.array_equal(y_bf, x_bf.reshape(2, 4, 256)))

    print("KERNEL_OK")
</pallas_src>

<mosaic_0001>
module attributes {stable_mosaic.version = 11 : i64} {
  func.func @_copy_kernel(%arg0: i32, %arg1: memref<2x1024xf32, #tpu.memory_space<vmem>>, %arg2: memref<2x1024xf32, #tpu.memory_space<vmem>>) attributes {dimension_semantics = [#tpu.dimension_semantics<parallel>], iteration_bounds = array<i64: 1>, scalar_prefetch = 0 : i64, scratch_operands = 0 : i64, tpu.core_type = #tpu.core_type<tc>, window_params = [{transform_indices = @transform_0, window_bounds = array<i64: 2, 1024>}, {transform_indices = @transform_1, window_bounds = array<i64: 2, 1024>}]} {
    %c0 = arith.constant 0 : index
    %c0_0 = arith.constant 0 : index
    %0 = vector.load %arg1[%c0, %c0_0] : memref<2x1024xf32, #tpu.memory_space<vmem>>, vector<2x1024xf32>
    %c0_1 = arith.constant 0 : index
    %c0_2 = arith.constant 0 : index
    %1 = vector.load %arg2[%c0_1, %c0_2] : memref<2x1024xf32, #tpu.memory_space<vmem>>, vector<2x1024xf32>
    tpu.vector_store %arg2[%c0_1, %c0_2], %0 {strides = array<i32>} : memref<2x1024xf32, #tpu.memory_space<vmem>>, vector<2x1024xf32>,
    return
  }
  func.func @transform_0(%arg0: i32) -> (i32, i32) {
    %c0_i32 = arith.constant 0 : i32
    %c0_i32_0 = arith.constant 0 : i32
    return %arg0, %c0_i32 : i32, i32
  }
  func.func @transform_1(%arg0: i32) -> (i32, i32) {
    %c0_i32 = arith.constant 0 : i32
    %c0_i32_0 = arith.constant 0 : i32
    return %arg0, %c0_i32 : i32, i32
  }
}

</mosaic_0001>

<llo_original>
// kernel: tpu_custom_call.1
$region0: #{tpu_custom_call.1}
  #allocation0 [shape = 'u32[]', space=smem, size = 0x4, offset = 0x4, fixed_abs, tag = 'smem constant byte address 0x4 - core index']
  #allocation1 [shape = 'u32[144,128]{1,0:T(1,128)}', space=vmem, size = 0x12000, scoped, tag = 'internal scratch']
  %s0 = inlined_call_operand.hbm [shape: f32[2,1024], index: 0, kind: input, shape index: {}]
  %s1 = inlined_call_operand.hbm [shape: f32[2,1024], index: 1, kind: output, shape index: {}]
  %s2 = sld [smem:[#allocation0]]
  $region18: #{tpu_custom_call.1} parent=0
    _
  %s4 = ssub.s32 1, %s2
  %s5 = scalar_select 0, %s4, %s2
  $region1: #{tpu_custom_call.1} parent=0
    #allocation2 [shape = 'u8[8192]{0}', space=vmem, size = 0x2000, scoped, tag = 'input window, operand 0, single buffered']
    #allocation3 [shape = 's32[1]{0}', space=sflag, size = 0x4, scoped, tag = 'scoped memory for tpu_custom_call.1']
    #allocation4 [shape = 's32[1]{0}', space=sflag, size = 0x4, scoped, tag = 'scoped memory for tpu_custom_call.1']
    #allocation5 [shape = 'u8[8192]{0}', space=vmem, size = 0x2000, scoped, tag = 'output window, operand 0, single buffered']
    %6 = vsyncpa [#allocation3], 0
    %7 = vsyncpa [#allocation4], 0
    // Predicated region
    $region2: #{tpu_custom_call.1} parent=1 // pred_check
      _
    $region3: #{tpu_custom_call.1} parent=1 // pred_check_branch
      %9 = sbr.rel (0) target = $region5
    $region4: #{tpu_custom_call.1} parent=1 // pred_region
      %s11 = ssub.s32 256, 256
      %12 = vsyncadd [#allocation3], %s11
      %s14 = sshll.u32 [#allocation2], 4
      %s15 = int_to_ptr.vmem [resolvable:$true] %s14
      %17 = dma.hbm_to_vmem [thread:$0]  %s0, 256, %s15, [#allocation3]
    $region5: #{tpu_custom_call.1} parent=1 // pred_fallthru
      _
    // Predicated region
    $region6: #{tpu_custom_call.1} parent=1 // pred_check
      _
    $region7: #{tpu_custom_call.1} parent=1 // pred_check_branch
      %19 = sbr.rel (0) target = $region9
    $region8: #{tpu_custom_call.1} parent=1 // pred_region
      %20 = dma.done [#allocation3], 256
    $region9: #{tpu_custom_call.1} parent=1 // pred_fallthru
      _
    %v21 = vld [vmem:[#allocation2] sm:$0xff]
    %v22 = vld [vmem:[#allocation2 + $0x8] sm:$0xff]
    %23 = vst [vmem:[#allocation5] sm:$0xff] %v21
    %24 = vst [vmem:[#allocation5 + $0x8] sm:$0xff] %v22
    // Predicated region
    $region10: #{tpu_custom_call.1} parent=1 // pred_check
      _
    $region11: #{tpu_custom_call.1} parent=1 // pred_check_branch
      %26 = sbr.rel (0) target = $region13
    $region12: #{tpu_custom_call.1} parent=1 // pred_region
      %s28 = ssub.s32 256, 256
      %29 = vsyncadd [#allocation4], %s28
      %s31 = sshll.u32 [#allocation5], 4
      %s32 = int_to_ptr.vmem [resolvable:$true] %s31
      %34 = dma.vmem_to_hbm [thread:$0]  %s32, 256, %s1, [#allocation4]
    $region13: #{tpu_custom_call.1} parent=1 // pred_fallthru
      _
    // Predicated region
    $region14: #{tpu_custom_call.1} parent=1 // pred_check
      _
    $region15: #{tpu_custom_call.1} parent=1 // pred_check_branch
      %36 = sbr.rel (0) target = $region17
    $region16: #{tpu_custom_call.1} parent=1 // pred_region
      %37 = dma.done [#allocation4], 256
    $region17: #{tpu_custom_call.1} parent=1 // pred_fallthru
      _
    %38 = vsyncpa [#allocation3], 1
    %39 = vsyncpa [#allocation4], 1

</llo_original>
